<compile_context>
chip_gen: v6e
topology: v6e:2x2x1
jax: 0.10.0
libtpu: 0.0.40
codegen_flags: <defaults>
</compile_context>

<pallas_src>
import functools

import numpy as np
import jax
import jax.numpy as jnp
from jax.experimental import pallas as pl
from jax.experimental.pallas import tpu as pltpu

EPS = 1e-5  # nn.InstanceNorm2d default eps

# Tap order matches PyTorch kernel index order (ky, kx): t = (dy+1)*3 + (dx+1).
_OFFSETS = tuple((dy, dx) for dy in (-1, 0, 1) for dx in (-1, 0, 1))


def _tap_masks(H, W):
    """(9, H*W) f32 0/1 masks: mask[t, p] = 1 iff pixel p's tap-t neighbor is in-bounds."""
    r, c = np.meshgrid(np.arange(H), np.arange(W), indexing="ij")
    r = r.reshape(-1)
    c = c.reshape(-1)
    m = np.zeros((9, H * W), np.float32)
    for t, (dy, dx) in enumerate(_OFFSETS):
        m[t] = (r + dy >= 0) & (r + dy < H) & (c + dx >= 0) & (c + dx < W)
    return m


def _conv_block_kernel(x_ref, w1_ref, w2_ref, mask_ref, o_ref, *, H, W):
    """One grid step = one image.

    x_ref:    (1, Cin,  H*W)  channels on sublanes, spatial on lanes
    w1_ref:   (Cout, 9*Cin)   conv1 weights, K ordered (ky, kx, cin)
    w2_ref:   (Cout, 9*Cout)  conv2 weights, K ordered (ky, kx, cmid)
    mask_ref: (9, H*W)        0/1 zero-padding masks per tap
    o_ref:    (1, Cout, H*W)
    """
    HW = H * W
    masks = mask_ref[...]                                    # (9, HW), loaded once

    def im2col(a):
        # a: (C, HW) -> (9*C, HW); row block t holds a shifted by tap t, with
        # out-of-image neighbors zeroed (== the conv's zero padding).
        cols = []
        for t, (dy, dx) in enumerate(_OFFSETS):
            s = dy * W + dx                                  # neighbor offset in flattened p
            # out[p] = a[(p + s) % HW]; wrap-around lanes are zeroed by the mask.
            shifted = a if s == 0 else pltpu.roll(a, shift=(-s) % HW, axis=1)
            cols.append(shifted * masks[t:t + 1])
        return jnp.concatenate(cols, axis=0)

    def stage(a, w):
        # Conv2d(3x3, pad=1, bias=False) as one MXU matmul, then InstanceNorm2d
        # (affine=False, biased var) + LeakyReLU(0.2). Dropout2d == identity (eval).
        y = jnp.dot(w, im2col(a), preferred_element_type=jnp.float32)   # (Cout, HW)
        mean = jnp.mean(y, axis=1, keepdims=True)
        yc = y - mean
        var = jnp.mean(yc * yc, axis=1, keepdims=True)
        y = yc * jax.lax.rsqrt(var + EPS)                    # EUP rsqrt
        return jnp.where(y > 0, y, 0.2 * y)

    x = x_ref[0].astype(jnp.float32)                         # (Cin, HW)
    h = stage(x, w1_ref[...])                                # intermediate never leaves the chip
    o_ref[0] = stage(h, w2_ref[...]).astype(o_ref.dtype)


@jax.jit
def conv_block(x_nchw, w1, w2):
    """ConvBlock forward.

    x_nchw: (N, Cin, H, W); w1: (Cout, Cin, 3, 3); w2: (Cout, Cout, 3, 3).
    Returns (N, Cout, H, W).
    """
    N, Cin, H, W = x_nchw.shape
    Cout = w1.shape[0]
    HW = H * W

    # Contiguous (free) reshape: NCHW -> (N, C, H*W); spatial lands on the lane axis.
    x2 = x_nchw.reshape(N, Cin, HW).astype(jnp.float32)

    def to_mat(w):  # (Cout, C, 3, 3) -> (Cout, 9*C), K ordered (ky, kx, c)
        co, c = w.shape[0], w.shape[1]
        return jnp.transpose(w, (0, 2, 3, 1)).reshape(co, 9 * c).astype(jnp.float32)

    masks = jnp.asarray(_tap_masks(H, W))                    # tiny constant, VMEM-resident

    kernel = functools.partial(_conv_block_kernel, H=H, W=W)
    out = pl.pallas_call(
        kernel,
        out_shape=jax.ShapeDtypeStruct((N, Cout, HW), jnp.float32),
        grid_spec=pltpu.PrefetchScalarGridSpec(
            num_scalar_prefetch=0,
            grid=(N,),
            in_specs=[
                pl.BlockSpec((1, Cin, HW), lambda n: (n, 0, 0)),
                pl.BlockSpec((Cout, 9 * Cin), lambda n: (0, 0)),    # resident across steps
                pl.BlockSpec((Cout, 9 * Cout), lambda n: (0, 0)),   # resident across steps
                pl.BlockSpec((9, HW), lambda n: (0, 0)),            # resident across steps
            ],
            out_specs=pl.BlockSpec((1, Cout, HW), lambda n: (n, 0, 0)),
        ),
        # "parallel" lets v7x's 2 TensorCores split the batch; v5e/v6e just loop.
        compiler_params=pltpu.CompilerParams(dimension_semantics=("parallel",)),
    )(x2, to_mat(w1), to_mat(w2), masks)

    return out.reshape(N, Cout, H, W)                        # free reshape back to NCHW


def _reference(x_nchw, w1, w2):
    """Pure-JAX reference for validation."""
    def block(x, w):
        y = jax.lax.conv_general_dilated(
            x, w, window_strides=(1, 1), padding=((1, 1), (1, 1)),
            dimension_numbers=("NCHW", "OIHW", "NCHW"))
        mean = jnp.mean(y, axis=(2, 3), keepdims=True)
        var = jnp.mean((y - mean) ** 2, axis=(2, 3), keepdims=True)
        y = (y - mean) * jax.lax.rsqrt(var + EPS)
        return jnp.where(y > 0, y, 0.2 * y)
    return block(block(x_nchw, w1), w2)


if __name__ == "__main__":
    # Small shapes consistent with the module: batch=2, in_channels=4,
    # out_channels=8, spatial=16x16. drop_prob irrelevant in eval mode.
    N, Cin, Cout, H, W = 2, 4, 8, 16, 16

    key = jax.random.PRNGKey(0)
    kx, k1, k2 = jax.random.split(key, 3)
    x = jax.random.normal(kx, (N, Cin, H, W), dtype=jnp.float32)
    # Deterministic "Kaiming-ish" init for the two 3x3 convs (bias=False).
    w1 = jax.random.normal(k1, (Cout, Cin, 3, 3), dtype=jnp.float32) * (1.0 / (Cin * 9) ** 0.5)
    w2 = jax.random.normal(k2, (Cout, Cout, 3, 3), dtype=jnp.float32) * (1.0 / (Cout * 9) ** 0.5)

    out = jax.block_until_ready(conv_block(x, w1, w2))
    ref = jax.block_until_ready(_reference(x, w1, w2))

    assert out.shape == (N, Cout, H, W)
    assert jnp.allclose(out, ref, atol=1e-4, rtol=1e-4), "mismatch vs reference"
    print("KERNEL_OK")
</pallas_src>

<mosaic_0001>
module attributes {stable_mosaic.version = 11 : i64} {
  func.func @_conv_block_kernel(%arg0: i32, %arg1: memref<1x4x256xf32, #tpu.memory_space<vmem>>, %arg2: memref<8x36xf32, #tpu.memory_space<vmem>>, %arg3: memref<8x72xf32, #tpu.memory_space<vmem>>, %arg4: memref<9x256xf32, #tpu.memory_space<vmem>>, %arg5: memref<1x8x256xf32, #tpu.memory_space<vmem>>) attributes {dimension_semantics = [#tpu.dimension_semantics<parallel>], iteration_bounds = array<i64: 2>, scalar_prefetch = 0 : i64, scratch_operands = 0 : i64, tpu.core_type = #tpu.core_type<tc>, window_params = [{transform_indices = @transform_0, window_bounds = array<i64: 1, 4, 256>}, {pipeline_mode = #tpu.pipeline_mode<synchronous>, transform_indices = @transform_1, window_bounds = array<i64: 8, 36>}, {pipeline_mode = #tpu.pipeline_mode<synchronous>, transform_indices = @transform_2, window_bounds = array<i64: 8, 72>}, {pipeline_mode = #tpu.pipeline_mode<synchronous>, transform_indices = @transform_3, window_bounds = array<i64: 9, 256>}, {transform_indices = @transform_4, window_bounds = array<i64: 1, 8, 256>}]} {
    %c0 = arith.constant 0 : index
    %c0_0 = arith.constant 0 : index
    %0 = vector.load %arg4[%c0, %c0_0] : memref<9x256xf32, #tpu.memory_space<vmem>>, vector<9x256xf32>
    %c0_1 = arith.constant 0 : index
    %c0_2 = arith.constant 0 : index
    %c0_3 = arith.constant 0 : index
    %1 = vector.load %arg1[%c0_1, %c0_2, %c0_3] : memref<1x4x256xf32, #tpu.memory_space<vmem>>, vector<1x4x256xf32>
    %2 = vector.shape_cast %1 : vector<1x4x256xf32> to vector<4x256xf32>
    %c0_4 = arith.constant 0 : index
    %c0_5 = arith.constant 0 : index
    %3 = vector.load %arg2[%c0_4, %c0_5] : memref<8x36xf32, #tpu.memory_space<vmem>>, vector<8x36xf32>
    %c17_i32 = arith.constant 17 : i32
    %4 = tpu.dynamic_rotate %2 by %c17_i32 dim 1 : vector<4x256xf32>, i32 -> vector<4x256xf32>
    %5 = vector.extract_strided_slice %0 {offsets = [0, 0], sizes = [1, 256], strides = [1, 1]} : vector<9x256xf32> to vector<1x256xf32>
    %6 = vector.broadcast %5 : vector<1x256xf32> to vector<4x256xf32>
    %7 = arith.mulf %4, %6 : vector<4x256xf32>
    %c16_i32 = arith.constant 16 : i32
    %8 = tpu.dynamic_rotate %2 by %c16_i32 dim 1 : vector<4x256xf32>, i32 -> vector<4x256xf32>
    %9 = vector.extract_strided_slice %0 {offsets = [1, 0], sizes = [1, 256], strides = [1, 1]} : vector<9x256xf32> to vector<1x256xf32>
    %10 = vector.broadcast %9 : vector<1x256xf32> to vector<4x256xf32>
    %11 = arith.mulf %8, %10 : vector<4x256xf32>
    %c15_i32 = arith.constant 15 : i32
    %12 = tpu.dynamic_rotate %2 by %c15_i32 dim 1 : vector<4x256xf32>, i32 -> vector<4x256xf32>
    %13 = vector.extract_strided_slice %0 {offsets = [2, 0], sizes = [1, 256], strides = [1, 1]} : vector<9x256xf32> to vector<1x256xf32>
    %14 = vector.broadcast %13 : vector<1x256xf32> to vector<4x256xf32>
    %15 = arith.mulf %12, %14 : vector<4x256xf32>
    %c1_i32 = arith.constant 1 : i32
    %16 = tpu.dynamic_rotate %2 by %c1_i32 dim 1 : vector<4x256xf32>, i32 -> vector<4x256xf32>
    %17 = vector.extract_strided_slice %0 {offsets = [3, 0], sizes = [1, 256], strides = [1, 1]} : vector<9x256xf32> to vector<1x256xf32>
    %18 = vector.broadcast %17 : vector<1x256xf32> to vector<4x256xf32>
    %19 = arith.mulf %16, %18 : vector<4x256xf32>
    %20 = vector.extract_strided_slice %0 {offsets = [4, 0], sizes = [1, 256], strides = [1, 1]} : vector<9x256xf32> to vector<1x256xf32>
    %21 = vector.broadcast %20 : vector<1x256xf32> to vector<4x256xf32>
    %22 = arith.mulf %2, %21 : vector<4x256xf32>
    %c255_i32 = arith.constant 255 : i32
    %23 = tpu.dynamic_rotate %2 by %c255_i32 dim 1 : vector<4x256xf32>, i32 -> vector<4x256xf32>
    %24 = vector.extract_strided_slice %0 {offsets = [5, 0], sizes = [1, 256], strides = [1, 1]} : vector<9x256xf32> to vector<1x256xf32>
    %25 = vector.broadcast %24 : vector<1x256xf32> to vector<4x256xf32>
    %26 = arith.mulf %23, %25 : vector<4x256xf32>
    %c241_i32 = arith.constant 241 : i32
    %27 = tpu.dynamic_rotate %2 by %c241_i32 dim 1 : vector<4x256xf32>, i32 -> vector<4x256xf32>
    %28 = vector.extract_strided_slice %0 {offsets = [6, 0], sizes = [1, 256], strides = [1, 1]} : vector<9x256xf32> to vector<1x256xf32>
    %29 = vector.broadcast %28 : vector<1x256xf32> to vector<4x256xf32>
    %30 = arith.mulf %27, %29 : vector<4x256xf32>
    %c240_i32 = arith.constant 240 : i32
    %31 = tpu.dynamic_rotate %2 by %c240_i32 dim 1 : vector<4x256xf32>, i32 -> vector<4x256xf32>
    %32 = vector.extract_strided_slice %0 {offsets = [7, 0], sizes = [1, 256], strides = [1, 1]} : vector<9x256xf32> to vector<1x256xf32>
    %33 = vector.broadcast %32 : vector<1x256xf32> to vector<4x256xf32>
    %34 = arith.mulf %31, %33 : vector<4x256xf32>
    %c239_i32 = arith.constant 239 : i32
    %35 = tpu.dynamic_rotate %2 by %c239_i32 dim 1 : vector<4x256xf32>, i32 -> vector<4x256xf32>
    %36 = vector.extract_strided_slice %0 {offsets = [8, 0], sizes = [1, 256], strides = [1, 1]} : vector<9x256xf32> to vector<1x256xf32>
    %37 = vector.broadcast %36 : vector<1x256xf32> to vector<4x256xf32>
    %38 = arith.mulf %35, %37 : vector<4x256xf32>
    %39 = tpu.concatenate %7, %11, %15, %19, %22, %26, %30, %34, %38 in 0 : vector<4x256xf32>, vector<4x256xf32>, vector<4x256xf32>, vector<4x256xf32>, vector<4x256xf32>, vector<4x256xf32>, vector<4x256xf32>, vector<4x256xf32>, vector<4x256xf32> -> vector<36x256xf32>
    %cst = arith.constant dense<0.000000e+00> : vector<8x256xf32>
    %40 = tpu.matmul %3, %39, %cst {dimension_numbers = #tpu.dot_dimension_numbers<[1], [0], [0], [1], [0, 0, 1, 1], [], []>} : vector<8x36xf32>, vector<36x256xf32>, vector<8x256xf32> -> vector<8x256xf32>
    %cst_6 = arith.constant dense<0.000000e+00> : vector<8xf32>
    %41 = vector.multi_reduction <add>, %40, %cst_6 [1] : vector<8x256xf32> to vector<8xf32>
    %42 = vector.shape_cast %41 : vector<8xf32> to vector<8x1xf32>
    %cst_7 = arith.constant 2.560000e+02 : f32
    %43 = vector.broadcast %cst_7 : f32 to vector<8x1xf32>
    %44 = arith.divf %42, %43 : vector<8x1xf32>
    %45 = vector.broadcast %44 : vector<8x1xf32> to vector<8x256xf32>
    %46 = arith.subf %40, %45 : vector<8x256xf32>
    %47 = arith.mulf %46, %46 : vector<8x256xf32>
    %cst_8 = arith.constant dense<0.000000e+00> : vector<8xf32>
    %48 = vector.multi_reduction <add>, %47, %cst_8 [1] : vector<8x256xf32> to vector<8xf32>
    %49 = vector.shape_cast %48 : vector<8xf32> to vector<8x1xf32>
    %cst_9 = arith.constant 2.560000e+02 : f32
    %50 = vector.broadcast %cst_9 : f32 to vector<8x1xf32>
    %51 = arith.divf %49, %50 : vector<8x1xf32>
    %cst_10 = arith.constant 9.99999974E-6 : f32
    %52 = vector.broadcast %cst_10 : f32 to vector<8x1xf32>
    %53 = arith.addf %51, %52 : vector<8x1xf32>
    %54 = math.rsqrt %53 : vector<8x1xf32>
    %55 = vector.broadcast %54 : vector<8x1xf32> to vector<8x256xf32>
    %56 = arith.mulf %46, %55 : vector<8x256xf32>
    %cst_11 = arith.constant 0.000000e+00 : f32
    %57 = vector.broadcast %cst_11 : f32 to vector<8x256xf32>
    %58 = arith.cmpf ogt, %56, %57 : vector<8x256xf32>
    %cst_12 = arith.constant 2.000000e-01 : f32
    %59 = vector.broadcast %cst_12 : f32 to vector<8x256xf32>
    %60 = arith.mulf %59, %56 : vector<8x256xf32>
    %61 = arith.select %58, %56, %60 : vector<8x256xi1>, vector<8x256xf32>
    %c0_13 = arith.constant 0 : index
    %c0_14 = arith.constant 0 : index
    %62 = vector.load %arg3[%c0_13, %c0_14] : memref<8x72xf32, #tpu.memory_space<vmem>>, vector<8x72xf32>
    %c17_i32_15 = arith.constant 17 : i32
    %63 = tpu.dynamic_rotate %61 by %c17_i32_15 dim 1 : vector<8x256xf32>, i32 -> vector<8x256xf32>
    %64 = vector.extract_strided_slice %0 {offsets = [0, 0], sizes = [1, 256], strides = [1, 1]} : vector<9x256xf32> to vector<1x256xf32>
    %65 = vector.broadcast %64 : vector<1x256xf32> to vector<8x256xf32>
    %66 = arith.mulf %63, %65 : vector<8x256xf32>
    %c16_i32_16 = arith.constant 16 : i32
    %67 = tpu.dynamic_rotate %61 by %c16_i32_16 dim 1 : vector<8x256xf32>, i32 -> vector<8x256xf32>
    %68 = vector.extract_strided_slice %0 {offsets = [1, 0], sizes = [1, 256], strides = [1, 1]} : vector<9x256xf32> to vector<1x256xf32>
    %69 = vector.broadcast %68 : vector<1x256xf32> to vector<8x256xf32>
    %70 = arith.mulf %67, %69 : vector<8x256xf32>
    %c15_i32_17 = arith.constant 15 : i32
    %71 = tpu.dynamic_rotate %61 by %c15_i32_17 dim 1 : vector<8x256xf32>, i32 -> vector<8x256xf32>
    %72 = vector.extract_strided_slice %0 {offsets = [2, 0], sizes = [1, 256], strides = [1, 1]} : vector<9x256xf32> to vector<1x256xf32>
    %73 = vector.broadcast %72 : vector<1x256xf32> to vector<8x256xf32>
    %74 = arith.mulf %71, %73 : vector<8x256xf32>
    %c1_i32_18 = arith.constant 1 : i32
    %75 = tpu.dynamic_rotate %61 by %c1_i32_18 dim 1 : vector<8x256xf32>, i32 -> vector<8x256xf32>
    %76 = vector.extract_strided_slice %0 {offsets = [3, 0], sizes = [1, 256], strides = [1, 1]} : vector<9x256xf32> to vector<1x256xf32>
    %77 = vector.broadcast %76 : vector<1x256xf32> to vector<8x256xf32>
    %78 = arith.mulf %75, %77 : vector<8x256xf32>
    %79 = vector.extract_strided_slice %0 {offsets = [4, 0], sizes = [1, 256], strides = [1, 1]} : vector<9x256xf32> to vector<1x256xf32>
    %80 = vector.broadcast %79 : vector<1x256xf32> to vector<8x256xf32>
    %81 = arith.mulf %61, %80 : vector<8x256xf32>
    %c255_i32_19 = arith.constant 255 : i32
    %82 = tpu.dynamic_rotate %61 by %c255_i32_19 dim 1 : vector<8x256xf32>, i32 -> vector<8x256xf32>
    %83 = vector.extract_strided_slice %0 {offsets = [5, 0], sizes = [1, 256], strides = [1, 1]} : vector<9x256xf32> to vector<1x256xf32>
    %84 = vector.broadcast %83 : vector<1x256xf32> to vector<8x256xf32>
    %85 = arith.mulf %82, %84 : vector<8x256xf32>
    %c241_i32_20 = arith.constant 241 : i32
    %86 = tpu.dynamic_rotate %61 by %c241_i32_20 dim 1 : vector<8x256xf32>, i32 -> vector<8x256xf32>
    %87 = vector.extract_strided_slice %0 {offsets = [6, 0], sizes = [1, 256], strides = [1, 1]} : vector<9x256xf32> to vector<1x256xf32>
    %88 = vector.broadcast %87 : vector<1x256xf32> to vector<8x256xf32>
    %89 = arith.mulf %86, %88 : vector<8x256xf32>
    %c240_i32_21 = arith.constant 240 : i32
    %90 = tpu.dynamic_rotate %61 by %c240_i32_21 dim 1 : vector<8x256xf32>, i32 -> vector<8x256xf32>
    %91 = vector.extract_strided_slice %0 {offsets = [7, 0], sizes = [1, 256], strides = [1, 1]} : vector<9x256xf32> to vector<1x256xf32>
    %92 = vector.broadcast %91 : vector<1x256xf32> to vector<8x256xf32>
    %93 = arith.mulf %90, %92 : vector<8x256xf32>
    %c239_i32_22 = arith.constant 239 : i32
    %94 = tpu.dynamic_rotate %61 by %c239_i32_22 dim 1 : vector<8x256xf32>, i32 -> vector<8x256xf32>
    %95 = vector.extract_strided_slice %0 {offsets = [8, 0], sizes = [1, 256], strides = [1, 1]} : vector<9x256xf32> to vector<1x256xf32>
    %96 = vector.broadcast %95 : vector<1x256xf32> to vector<8x256xf32>
    %97 = arith.mulf %94, %96 : vector<8x256xf32>
    %98 = tpu.concatenate %66, %70, %74, %78, %81, %85, %89, %93, %97 in 0 : vector<8x256xf32>, vector<8x256xf32>, vector<8x256xf32>, vector<8x256xf32>, vector<8x256xf32>, vector<8x256xf32>, vector<8x256xf32>, vector<8x256xf32>, vector<8x256xf32> -> vector<72x256xf32>
    %cst_23 = arith.constant dense<0.000000e+00> : vector<8x256xf32>
    %99 = tpu.matmul %62, %98, %cst_23 {dimension_numbers = #tpu.dot_dimension_numbers<[1], [0], [0], [1], [0, 0, 1, 1], [], []>} : vector<8x72xf32>, vector<72x256xf32>, vector<8x256xf32> -> vector<8x256xf32>
    %cst_24 = arith.constant dense<0.000000e+00> : vector<8xf32>
    %100 = vector.multi_reduction <add>, %99, %cst_24 [1] : vector<8x256xf32> to vector<8xf32>
    %101 = vector.shape_cast %100 : vector<8xf32> to vector<8x1xf32>
    %cst_25 = arith.constant 2.560000e+02 : f32
    %102 = vector.broadcast %cst_25 : f32 to vector<8x1xf32>
    %103 = arith.divf %101, %102 : vector<8x1xf32>
    %104 = vector.broadcast %103 : vector<8x1xf32> to vector<8x256xf32>
    %105 = arith.subf %99, %104 : vector<8x256xf32>
    %106 = arith.mulf %105, %105 : vector<8x256xf32>
    %cst_26 = arith.constant dense<0.000000e+00> : vector<8xf32>
    %107 = vector.multi_reduction <add>, %106, %cst_26 [1] : vector<8x256xf32> to vector<8xf32>
    %108 = vector.shape_cast %107 : vector<8xf32> to vector<8x1xf32>
    %cst_27 = arith.constant 2.560000e+02 : f32
    %109 = vector.broadcast %cst_27 : f32 to vector<8x1xf32>
    %110 = arith.divf %108, %109 : vector<8x1xf32>
    %cst_28 = arith.constant 9.99999974E-6 : f32
    %111 = vector.broadcast %cst_28 : f32 to vector<8x1xf32>
    %112 = arith.addf %110, %111 : vector<8x1xf32>
    %113 = math.rsqrt %112 : vector<8x1xf32>
    %114 = vector.broadcast %113 : vector<8x1xf32> to vector<8x256xf32>
    %115 = arith.mulf %105, %114 : vector<8x256xf32>
    %cst_29 = arith.constant 0.000000e+00 : f32
    %116 = vector.broadcast %cst_29 : f32 to vector<8x256xf32>
    %117 = arith.cmpf ogt, %115, %116 : vector<8x256xf32>
    %cst_30 = arith.constant 2.000000e-01 : f32
    %118 = vector.broadcast %cst_30 : f32 to vector<8x256xf32>
    %119 = arith.mulf %118, %115 : vector<8x256xf32>
    %120 = arith.select %117, %115, %119 : vector<8x256xi1>, vector<8x256xf32>
    %c0_31 = arith.constant 0 : index
    %c0_32 = arith.constant 0 : index
    %c0_33 = arith.constant 0 : index
    %121 = vector.load %arg5[%c0_31, %c0_32, %c0_33] : memref<1x8x256xf32, #tpu.memory_space<vmem>>, vector<1x8x256xf32>
    %122 = vector.shape_cast %121 : vector<1x8x256xf32> to vector<8x256xf32>
    %123 = vector.shape_cast %120 : vector<8x256xf32> to vector<1x8x256xf32>
    tpu.vector_store %arg5[%c0_31, %c0_32, %c0_33], %123 {strides = array<i32>} : memref<1x8x256xf32, #tpu.memory_space<vmem>>, vector<1x8x256xf32>,
    return
  }
  func.func @transform_0(%arg0: i32) -> (i32, i32, i32) {
    %c0_i32 = arith.constant 0 : i32
    %c0_i32_0 = arith.constant 0 : i32
    %c0_i32_1 = arith.constant 0 : i32
    return %arg0, %c0_i32, %c0_i32_0 : i32, i32, i32
  }
  func.func @transform_1(%arg0: i32) -> (i32, i32) {
    %c0_i32 = arith.constant 0 : i32
    %c0_i32_0 = arith.constant 0 : i32
    %c0_i32_1 = arith.constant 0 : i32
    return %c0_i32, %c0_i32_0 : i32, i32
  }
  func.func @transform_2(%arg0: i32) -> (i32, i32) {
    %c0_i32 = arith.constant 0 : i32
    %c0_i32_0 = arith.constant 0 : i32
    %c0_i32_1 = arith.constant 0 : i32
    return %c0_i32, %c0_i32_0 : i32, i32
  }
  func.func @transform_3(%arg0: i32) -> (i32, i32) {
    %c0_i32 = arith.constant 0 : i32
    %c0_i32_0 = arith.constant 0 : i32
    %c0_i32_1 = arith.constant 0 : i32
    return %c0_i32, %c0_i32_0 : i32, i32
  }
  func.func @transform_4(%arg0: i32) -> (i32, i32, i32) {
    %c0_i32 = arith.constant 0 : i32
    %c0_i32_0 = arith.constant 0 : i32
    %c0_i32_1 = arith.constant 0 : i32
    return %arg0, %c0_i32, %c0_i32_0 : i32, i32, i32
  }
}

</mosaic_0001>

<llo_original>
// kernel: conv_block.1
$region0: #{conv_block.1}
  #allocation0 [shape = 'u32[]', space=smem, size = 0x4, offset = 0x4, fixed_abs, tag = 'smem constant byte address 0x4 - core index']
  #allocation1 [shape = 'u32[144,128]{1,0:T(1,128)}', space=vmem, size = 0x12000, scoped, tag = 'internal scratch']
  %s0 = inlined_call_operand.vmem [shape: f32[2,4,256], index: 0, kind: input, shape index: {}]
  %s1 = inlined_call_operand.vmem [shape: f32[8,36], index: 1, kind: input, shape index: {}]
  %s2 = inlined_call_operand.vmem [shape: f32[8,72], index: 2, kind: input, shape index: {}]
  %s3 = inlined_call_operand.vmem [shape: f32[9,256], index: 3, kind: input, shape index: {}]
  %s4 = inlined_call_operand.vmem [shape: f32[2,8,256], index: 4, kind: output, shape index: {}]
  %s5 = sld [smem:[#allocation0]]
  $region49: #{conv_block.1} parent=0
    _
  %s7 = ssub.s32 1, %s5
  %s8 = scalar_select 0, %s7, %s5
  loop: start=0, step=1, limit=4
  $region2: #{conv_block.1} parent=0 // loop_pre_header
    _
  $region3: #{conv_block.1} parent=0 // loop_header
    %s10 = sphi 0, %s14
    %p11 = scmp.ge.s32.totalorder %s10, 4
    %s20 = sphi 0, %s22
    %s23 = sphi 0, %s20
    %s24 = sphi 0, %s23
    %s40 = sphi 0, %s24
    %s44 = sphi 0, %s44
    %s46 = sphi 0, %s44
    %s47 = sphi 0, %s46
    %s61 = sphi 0, %s47
    %s65 = sphi 0, %s65
    %s67 = sphi 0, %s65
    %s68 = sphi 0, %s67
    %s82 = sphi 0, %s68
    %s86 = sphi 0, %s86
    %s88 = sphi 0, %s86
    %s89 = sphi 0, %s88
    %s103 = sphi 0, %s89
    %s109 = sphi 0, %s111
    %s112 = sphi 0, %s109
    %s113 = sphi 0, %s112
    %s129 = sphi 0, %s113
  $region4: #{conv_block.1} parent=0 // loop_header_branch
    %13 = sbr.rel (%p11) target = $region8
  $region5: #{conv_block.1} parent=0 // loop_body
    %s15 = ssub.s32 %s10, 1
    %s16 = ssub.s32 %s10, 2
    %s17 = sadd.s32 %s10, 1
    %s18 = ssub.s32 %s10, %s17
    %p19 = scmp.eq.s32.totalorder %s18, 0
    %s21 = sadd.s32 %s20, 1
    %s22 = scalar_select %p19, %s20, %s21
    %p25 = pneg %p19
    %p26 = scmp.eq.s32.totalorder %s10, 1
    %p27 = por %p25, %p26
    %p28 = scmp.ne.s32.totalorder %s20, %s23
    %p29 = scmp.eq.s32.totalorder %s10, 0
    %p30 = por %p28, %p29
    %p31 = scmp.ne.s32.totalorder %s20, %s23
    %p32 = scmp.eq.s32.totalorder %s15, 1
    %p33 = por %p31, %p32
    %p34 = scmp.ne.s32.totalorder %s23, %s24
    %p35 = scmp.eq.s32.totalorder %s15, 0
    %p36 = por %p34, %p35
    %p37 = scmp.ne.s32.totalorder %s23, %s24
    %p38 = scmp.eq.s32.totalorder %s16, 1
    %p39 = por %p37, %p38
    %p41 = scmp.ne.s32.totalorder %s24, %s40
    %p42 = scmp.eq.s32.totalorder %s16, 0
    %p43 = por %p41, %p42
    %s45 = sadd.s32 %s44, 1
    %p48 = scmp.eq.s32.totalorder %s10, 1
    %p49 = scmp.ne.s32.totalorder %s44, %s46
    %p50 = scmp.eq.s32.totalorder %s10, 0
    %p51 = por %p49, %p50
    %p52 = scmp.ne.s32.totalorder %s44, %s46
    %p53 = scmp.eq.s32.totalorder %s15, 1
    %p54 = por %p52, %p53
    %p55 = scmp.ne.s32.totalorder %s46, %s47
    %p56 = scmp.eq.s32.totalorder %s15, 0
    %p57 = por %p55, %p56
    %p58 = scmp.ne.s32.totalorder %s46, %s47
    %p59 = scmp.eq.s32.totalorder %s16, 1
    %p60 = por %p58, %p59
    %p62 = scmp.ne.s32.totalorder %s47, %s61
    %p63 = scmp.eq.s32.totalorder %s16, 0
    %p64 = por %p62, %p63
    %s66 = sadd.s32 %s65, 1
    %p69 = scmp.eq.s32.totalorder %s10, 1
    %p70 = scmp.ne.s32.totalorder %s65, %s67
    %p71 = scmp.eq.s32.totalorder %s10, 0
    %p72 = por %p70, %p71
    %p73 = scmp.ne.s32.totalorder %s65, %s67
    %p74 = scmp.eq.s32.totalorder %s15, 1
    %p75 = por %p73, %p74
    %p76 = scmp.ne.s32.totalorder %s67, %s68
    %p77 = scmp.eq.s32.totalorder %s15, 0
    %p78 = por %p76, %p77
    %p79 = scmp.ne.s32.totalorder %s67, %s68
    %p80 = scmp.eq.s32.totalorder %s16, 1
    %p81 = por %p79, %p80
    %p83 = scmp.ne.s32.totalorder %s68, %s82
    %p84 = scmp.eq.s32.totalorder %s16, 0
    %p85 = por %p83, %p84
    %s87 = sadd.s32 %s86, 1
    %p90 = scmp.eq.s32.totalorder %s10, 1
    %p91 = scmp.ne.s32.totalorder %s86, %s88
    %p92 = scmp.eq.s32.totalorder %s10, 0
    %p93 = por %p91, %p92
    %p94 = scmp.ne.s32.totalorder %s86, %s88
    %p95 = scmp.eq.s32.totalorder %s15, 1
    %p96 = por %p94, %p95
    %p97 = scmp.ne.s32.totalorder %s88, %s89
    %p98 = scmp.eq.s32.totalorder %s15, 0
    %p99 = por %p97, %p98
    %p100 = scmp.ne.s32.totalorder %s88, %s89
    %p101 = scmp.eq.s32.totalorder %s16, 1
    %p102 = por %p100, %p101
    %p104 = scmp.ne.s32.totalorder %s89, %s103
    %p105 = scmp.eq.s32.totalorder %s16, 0
    %p106 = por %p104, %p105
    %s107 = ssub.s32 %s10, %s17
    %p108 = scmp.eq.s32.totalorder %s107, 0
    %s110 = sadd.s32 %s109, 1
    %s111 = scalar_select %p108, %s109, %s110
    %p114 = pneg %p108
    %p115 = scmp.eq.s32.totalorder %s10, 1
    %p116 = por %p114, %p115
    %p117 = scmp.ne.s32.totalorder %s109, %s112
    %p118 = scmp.eq.s32.totalorder %s10, 0
    %p119 = por %p117, %p118
    %p120 = scmp.ne.s32.totalorder %s109, %s112
    %p121 = scmp.eq.s32.totalorder %s15, 1
    %p122 = por %p120, %p121
    %p123 = scmp.ne.s32.totalorder %s112, %s113
    %p124 = scmp.eq.s32.totalorder %s15, 0
    %p125 = por %p123, %p124
    %p126 = scmp.ne.s32.totalorder %s112, %s113
    %p127 = scmp.eq.s32.totalorder %s16, 1
    %p128 = por %p126, %p127
    %p130 = scmp.ne.s32.totalorder %s113, %s129
    %p131 = scmp.eq.s32.totalorder %s16, 0
    %p132 = por %p130, %p131
    %p133 = scmp.le.s32.totalorder 1, %s10
    %p134 = scmp.lt.s32.totalorder %s10, 3
    %p135 = pnand %p133, %p134
    %p136 = pneg %p135
    // Predicated region
    $region9: #{conv_block.1} parent=5 // pred_check
      _
    $region10: #{conv_block.1} parent=5 // pred_check_branch
      %138 = sbr.rel (%p135) target = $region12
    $region11: #{conv_block.1} parent=5 // pred_region
      %s139 = ssub.s32 %s10, 1
      // Predicated region
      $region13: #{conv_block.1} parent=11 // pred_check
        %p140 = pneg %p57
      $region14: #{conv_block.1} parent=11 // pred_check_branch
        %142 = sbr.rel (%p140) target = $region16
      $region15: #{conv_block.1} parent=11 // pred_region
        _
      $region16: #{conv_block.1} parent=11 // pred_fallthru
        _
      // Predicated region
      $region17: #{conv_block.1} parent=11 // pred_check
        %p143 = pneg %p78
      $region18: #{conv_block.1} parent=11 // pred_check_branch
        %145 = sbr.rel (%p143) target = $region20
      $region19: #{conv_block.1} parent=11 // pred_region
        _
      $region20: #{conv_block.1} parent=11 // pred_fallthru
        _
      // Predicated region
      $region21: #{conv_block.1} parent=11 // pred_check
        %p146 = pneg %p99
      $region22: #{conv_block.1} parent=11 // pred_check_branch
        %148 = sbr.rel (%p146) target = $region24
      $region23: #{conv_block.1} parent=11 // pred_region
        _
      $region24: #{conv_block.1} parent=11 // pred_fallthru
        _
    $region12: #{conv_block.1} parent=5 // pred_fallthru
      _
    %p149 = scmp.lt.s32.totalorder %s10, 2
    // Predicated region
    $region25: #{conv_block.1} parent=5 // pred_check
      %p150 = pneg %p149
    $region26: #{conv_block.1} parent=5 // pred_check_branch
      %152 = sbr.rel (%p150) target = $region28
    $region27: #{conv_block.1} parent=5 // pred_region
      // Predicated region
      $region29: #{conv_block.1} parent=27 // pred_check
        %p153 = pneg %p30
      $region30: #{conv_block.1} parent=27 // pred_check_branch
        %155 = sbr.rel (%p153) target = $region32
      $region31: #{conv_block.1} parent=27 // pred_region
        %p156 = scmp.lt.s32.totalorder %s10, 1
        %s157 = scalar_select %p156, %s10, 1
        %s158 = smul.addr %s157, 2
        %s159 = smul.addr %s158, 4
        %s160 = scalar_lea.vmem %s0, %s159
      $region32: #{conv_block.1} parent=27 // pred_fallthru
        _
    $region28: #{conv_block.1} parent=5 // pred_fallthru
      _
    %p161 = scmp.le.s32.totalorder 1, %s10
    %p162 = scmp.lt.s32.totalorder %s10, 3
    %p163 = pnand %p161, %p162
    %p164 = pneg %p163
    // Predicated region
    $region33: #{conv_block.1} parent=5 // pred_check
      _
    $region34: #{conv_block.1} parent=5 // pred_check_branch
      %166 = sbr.rel (%p163) target = $region36
    $region35: #{conv_block.1} parent=5 // pred_region
      %s167 = ssub.s32 %s10, 1
      %p168 = scmp.lt.s32.totalorder %s15, 1
      %s169 = scalar_select %p168, %s15, 1
      %s170 = smul.addr %s169, 2
      %s171 = smul.addr %s170, 4
      %s172 = scalar_lea.vmem %s0, %s171
      %p173 = pneg %p36
      %p174 = pneg %p33
      %p175 = pneg %p57
      %p176 = pneg %p54
      %p177 = pneg %p78
      %p178 = pneg %p75
      %p179 = pneg %p99
      %p180 = pneg %p96
      %p181 = pneg %p125
      %p182 = pneg %p122
      %p183 = scmp.lt.s32.totalorder %s15, 1
      %s184 = scalar_select %p183, %s15, 1
      %s185 = smul.addr %s184, 2
      %s186 = smul.addr %s185, 8
      %s187 = scalar_lea.vmem %s4, %s186
      %p188 = scmp.lt.s32.totalorder %s15, 1
      %s189 = scalar_select %p188, %s15, 1
      %s190 = smul.addr %s189, 2
      %s191 = smul.addr %s190, 4
      %s192 = scalar_lea.vmem %s0, %s191
      %p193 = scmp.lt.s32.totalorder %s15, 1
      %s194 = scalar_select %p193, %s15, 1
      %s195 = smul.addr %s194, 2
      %s196 = smul.addr %s195, 8
      %s197 = scalar_lea.vmem %s4, %s196
      %v198 = vld [vmem:[%s3] sm:$0xff]
      %v199 = vld [vmem:[%s3 + $0x8] sm:$0xff]
      %v200 = vld [vmem:[%s3 + $0x10] sm:$0x1]
      %v201 = vld [vmem:[%s3 + $0x18] sm:$0x1]
      %v202 = vld [vmem:[%s192] sm:$0xff]
      %v203 = vld [vmem:[%s1] sm:$0xff]
      %v205 = vcombine.high %v202, %v202
      %207 = vrot.lane.b32.xlu0 %v202, 17
      %v208 = vpop.permute.xlu0 %207
      %209 = vrot.lane.b32.xlu0 %v205, 17
      %v210 = vpop.permute.xlu0 %209
      %v211 = vlaneseq
      %v212 = vand.u32 %v211, 127
      %vm213 = vcmp.lt.s32.totalorder %v212, 17
      %v214 = vsel %vm213, %v208, %v210
      %v215 = vsel %vm213, %v210, %v208
      %v216 = vlaneseq
      %v217 = vshrl.u32 %v216, 7
      %v218 = vsub.s32 0, %v217
      %v219 = vrot.slane %v198, %v218
      %v220 = vlaneseq
      %v221 = vshrl.u32 %v220, 7
      %v222 = vsub.s32 0, %v221
      %v223 = vrot.slane %v199, %v222
      %v224 = vmul.f32 %v215, %v219
      %v225 = vmul.f32 %v214, %v223
      %226 = vrot.lane.b32.xlu0 %v202, 16
      %v227 = vpop.permute.xlu0 %226
      %228 = vrot.lane.b32.xlu0 %v205, 16
      %v229 = vpop.permute.xlu0 %228
      %vm230 = vcmp.lt.s32.totalorder %v212, 16
      %v231 = vsel %vm230, %v227, %v229
      %v232 = vsel %vm230, %v229, %v227
      %v233 = vlaneseq
      %v234 = vshrl.u32 %v233, 7
      %v235 = vsub.s32 1, %v234
      %v236 = vrot.slane %v198, %v235
      %v237 = vlaneseq
      %v238 = vshrl.u32 %v237, 7
      %v239 = vsub.s32 1, %v238
      %v240 = vrot.slane %v199, %v239
      %v241 = vmul.f32 %v232, %v236
      %v242 = vmul.f32 %v231, %v240
      %243 = vrot.lane.b32.xlu0 %v202, 15
      %v244 = vpop.permute.xlu0 %243
      %245 = vrot.lane.b32.xlu0 %v205, 15
      %v246 = vpop.permute.xlu0 %245
      %vm247 = vcmp.lt.s32.totalorder %v212, 15
      %v248 = vsel %vm247, %v244, %v246
      %v249 = vsel %vm247, %v246, %v244
      %v250 = vlaneseq
      %v251 = vshrl.u32 %v250, 7
      %v252 = vsub.s32 2, %v251
      %v253 = vrot.slane %v198, %v252
      %v254 = vlaneseq
      %v255 = vshrl.u32 %v254, 7
      %v256 = vsub.s32 2, %v255
      %v257 = vrot.slane %v199, %v256
      %v258 = vmul.f32 %v249, %v253
      %v259 = vmul.f32 %v248, %v257
      %260 = vrot.lane.b32.xlu0 %v202, 1
      %v261 = vpop.permute.xlu0 %260
      %262 = vrot.lane.b32.xlu0 %v205, 1
      %v263 = vpop.permute.xlu0 %262
      %vm264 = vcmp.lt.s32.totalorder %v212, 1
      %v265 = vsel %vm264, %v261, %v263
      %v266 = vsel %vm264, %v263, %v261
      %v267 = vlaneseq
      %v268 = vshrl.u32 %v267, 7
      %v269 = vsub.s32 3, %v268
      %v270 = vrot.slane %v198, %v269
      %v271 = vlaneseq
      %v272 = vshrl.u32 %v271, 7
      %v273 = vsub.s32 3, %v272
      %v274 = vrot.slane %v199, %v273
      %v275 = vmul.f32 %v266, %v270
      %v276 = vmul.f32 %v265, %v274
      %v277 = vlaneseq
      %v278 = vshrl.u32 %v277, 7
      %v279 = vsub.s32 4, %v278
      %v280 = vrot.slane %v198, %v279
      %v281 = vlaneseq
      %v282 = vshrl.u32 %v281, 7
      %v283 = vsub.s32 4, %v282
      %v284 = vrot.slane %v199, %v283
      %v287 = vcombine.low %v280, %v284
      %v289 = vmul.f32 %v202, %v287
      %290 = vrot.lane.b32.xlu0 %v202, 127
      %v291 = vpop.permute.xlu0 %290
      %292 = vrot.lane.b32.xlu0 %v205, 127
      %v293 = vpop.permute.xlu0 %292
      %vm294 = vcmp.lt.s32.totalorder %v212, 127
      %v295 = vsel %vm294, %v291, %v293
      %v296 = vsel %vm294, %v293, %v291
      %v297 = vlaneseq
      %v298 = vshrl.u32 %v297, 7
      %v299 = vsub.s32 5, %v298
      %v300 = vrot.slane %v198, %v299
      %v301 = vlaneseq
      %v302 = vshrl.u32 %v301, 7
      %v303 = vsub.s32 5, %v302
      %v304 = vrot.slane %v199, %v303
      %v305 = vmul.f32 %v295, %v300
      %v306 = vmul.f32 %v296, %v304
      %307 = vrot.lane.b32.xlu0 %v202, 113
      %v308 = vpop.permute.xlu0 %307
      %309 = vrot.lane.b32.xlu0 %v205, 113
      %v310 = vpop.permute.xlu0 %309
      %vm311 = vcmp.lt.s32.totalorder %v212, 113
      %v312 = vsel %vm311, %v308, %v310
      %v313 = vsel %vm311, %v310, %v308
      %v314 = vlaneseq
      %v315 = vshrl.u32 %v314, 7
      %v316 = vsub.s32 6, %v315
      %v317 = vrot.slane %v198, %v316
      %v318 = vlaneseq
      %v319 = vshrl.u32 %v318, 7
      %v320 = vsub.s32 6, %v319
      %v321 = vrot.slane %v199, %v320
      %v322 = vmul.f32 %v312, %v317
      %v323 = vmul.f32 %v313, %v321
      %324 = vrot.lane.b32.xlu0 %v202, 112
      %v325 = vpop.permute.xlu0 %324
      %326 = vrot.lane.b32.xlu0 %v205, 112
      %v327 = vpop.permute.xlu0 %326
      %vm328 = vcmp.lt.s32.totalorder %v212, 112
      %v329 = vsel %vm328, %v325, %v327
      %v330 = vsel %vm328, %v327, %v325
      %v331 = vlaneseq
      %v332 = vshrl.u32 %v331, 7
      %v333 = vsub.s32 7, %v332
      %v334 = vrot.slane %v198, %v333
      %v335 = vlaneseq
      %v336 = vshrl.u32 %v335, 7
      %v337 = vsub.s32 7, %v336
      %v338 = vrot.slane %v199, %v337
      %v339 = vmul.f32 %v329, %v334
      %v340 = vmul.f32 %v330, %v338
      %341 = vrot.lane.b32.xlu0 %v202, 111
      %v342 = vpop.permute.xlu0 %341
      %343 = vrot.lane.b32.xlu0 %v205, 111
      %v344 = vpop.permute.xlu0 %343
      %vm345 = vcmp.lt.s32.totalorder %v212, 111
      %v346 = vsel %vm345, %v342, %v344
      %v347 = vsel %vm345, %v344, %v342
      %v348 = vlaneseq
      %v349 = vshrl.u32 %v348, 7
      %v350 = vsub.s32 0, %v349
      %v351 = vrot.slane %v200, %v350
      %v352 = vlaneseq
      %v353 = vshrl.u32 %v352, 7
      %v354 = vsub.s32 0, %v353
      %v355 = vrot.slane %v201, %v354
      %v356 = vmul.f32 %v346, %v351
      %v357 = vmul.f32 %v347, %v355
      %v360 = vrot.slane %v241, 4
      %v361 = vrot.slane %v242, 4
      %v366 = vrot.slane %v275, 4
      %v367 = vrot.slane %v276, 4
      %v371 = vcombine.high %v289, %v289
      %v375 = vrot.slane %v305, 4
      %v376 = vrot.slane %v306, 4
      %v381 = vrot.slane %v339, 4
      %v382 = vrot.slane %v340, 4
      %vm385 = vcmask 1043456
      %v386 = vsel %vm385, %v224, %v360
      %v387 = vsel %vm385, %v225, %v361
      %v388 = vsel %vm385, %v258, %v366
      %v389 = vsel %vm385, %v259, %v367
      %v390 = vsel %vm385, %v289, %v375
      %v391 = vsel %vm385, %v371, %v376
      %v392 = vsel %vm385, %v322, %v381
      %v393 = vsel %vm385, %v323, %v382
      %vm394 = vcmask 293888
      %v396 = vsel %vm394, %v203, 0
      %v399 = vsel %vm385, %v356, 0
      %v402 = vsel %vm385, %v357, 0
      %404 = vmatprep.subr.mxu0 0.0
      %405 = vmatpush1.msra.mxu0 0.0
      %406 = vmatprep.subr.mxu0 0.0
      %407 = vmatpush1.msra.mxu0 0.0
      %408 = vmatprep.subr.mxu0 0.0
      %409 = vmatpush1.msra.mxu0 0.0
      %410 = vmatprep.subr.mxu0 0.0
      %411 = vmatpush1.msra.mxu0 0.0
      %412 = vmatprep.subr.mxu0 0.0
      %413 = vmatpush1.msra.mxu0 0.0
      %414 = vmatprep.subr.mxu0 0.0
      %415 = vmatpush1.msra.mxu0 0.0
      %416 = vmatprep.subr.mxu0 0.0
      %417 = vmatpush1.msra.mxu0 0.0
      %418 = vmatprep.subr.mxu0 0.0
      %419 = vmatpush1.msra.mxu0 0.0
      %420 = vmatprep.subr.mxu0 0.0
      %421 = vmatpush1.msra.mxu0 0.0
      %422 = vmatprep.subr.mxu0 0.0
      %423 = vmatpush1.msra.mxu0 0.0
      %424 = vmatprep.subr.mxu0 0.0
      %425 = vmatpush1.msra.mxu0 0.0
      %426 = vmatprep.subr.mxu0 %v402
      %427 = vmatpush1.msra.mxu0 %v399
      %428 = vmatprep.subr.mxu0 %v393
      %429 = vmatpush1.msra.mxu0 %v392
      %430 = vmatprep.subr.mxu0 %v391
      %431 = vmatpush1.msra.mxu0 %v390
      %432 = vmatprep.subr.mxu0 %v389
      %433 = vmatpush1.msra.mxu0 %v388
      %434 = vmatprep.subr.mxu0 %v387
      %435 = vmatpush1.msra.mxu0 %v386
      %436 = vmatprep.subr.mxu0 0.0
      %437 = vmatpush2.msra.mxu0 0.0
      %438 = vmatprep.subr.mxu0 0.0
      %439 = vmatpush2.msra.mxu0 0.0
      %440 = vmatprep.subr.mxu0 0.0
      %441 = vmatpush2.msra.mxu0 0.0
      %442 = vmatprep.subr.mxu0 0.0
      %443 = vmatpush2.msra.mxu0 0.0
      %444 = vmatprep.subr.mxu0 0.0
      %445 = vmatpush2.msra.mxu0 0.0
      %446 = vmatprep.subr.mxu0 0.0
      %447 = vmatpush2.msra.mxu0 0.0
      %448 = vmatprep.subr.mxu0 0.0
      %449 = vmatpush2.msra.mxu0 0.0
      %450 = vmatprep.subr.mxu0 0.0
      %451 = vmatpush2.msra.mxu0 0.0
      %452 = vmatprep.subr.mxu0 0.0
      %453 = vmatpush2.msra.mxu0 0.0
      %454 = vmatprep.subr.mxu0 0.0
      %455 = vmatpush2.msra.mxu0 0.0
      %456 = vmatprep.subr.mxu0 0.0
      %457 = vmatpush2.msra.mxu0 0.0
      %458 = vmatprep.subr.mxu0 0.0
      %459 = vmatpush2.msra.mxu0 0.0
      %460 = vmatprep.subr.mxu0 0.0
      %461 = vmatpush2.msra.mxu0 0.0
      %462 = vmatprep.subr.mxu0 0.0
      %463 = vmatpush2.msra.mxu0 0.0
      %464 = vmatprep.subr.mxu0 0.0
      %465 = vmatpush2.msra.mxu0 0.0
      %466 = vmatprep.subr.mxu0 0.0
      %467 = vmatpush2.msra.mxu0 0.0
      %468 = vmatprep.mubr.f32.mxu0 0.0
      %469 = vmatmul.mubr.f32.gmra.mxu0 %v396
      %v470 = vpop.f32.mrf.mxu0
      %v471 = vadd.f32 0.0, %v470
      %v472 = vpop.f32.mrf.mxu0
      %v473 = vadd.f32 0.0, %v472
      %474 = vdwg.mxu0
      %v475 = vadd.f32 %v471, %v473
      %476 = vadd.xlane.f32.xlu0 %v475
      %v477 = vpop.xlane.xlu0 %476
      %v478 = vrcp.pop 256.0
      %v479 = vmul.f32 %v477, %v478
      %v480 = vsub.f32 %v471, %v479
      %v481 = vsub.f32 %v473, %v479
      %v482 = vmul.f32 %v480, %v480
      %v483 = vmul.f32 %v481, %v481
      %v484 = vadd.f32 %v482, %v483
      %485 = vadd.xlane.f32.xlu0 %v484
      %v486 = vpop.xlane.xlu0 %485
      %v487 = vmul.f32 %v486, %v478
      %v488 = vadd.f32 %v487, 1e-05
      %v489 = vrsqrt.pop %v488
      %v490 = vmul.f32 %v480, %v489
      %v491 = vmul.f32 %v481, %v489
      %vm492 = vcmp.gt.f32.partialorder %v490, 0.0
      %vm493 = vcmp.gt.f32.partialorder %v491, 0.0
      %v494 = vmul.f32 %v490, 0.2
      %v495 = vmul.f32 %v491, 0.2
      %v496 = vsel %vm492, %v490, %v494
      %v497 = vsel %vm493, %v491, %v495
      %v498 = vld [vmem:[%s2] sm:$0xff]
      %499 = vrot.lane.b32.xlu0 %v496, 17
      %v500 = vpop.permute.xlu0 %499
      %501 = vrot.lane.b32.xlu0 %v497, 17
      %v502 = vpop.permute.xlu0 %501
      %v503 = vsel %vm213, %v500, %v502
      %v504 = vsel %vm213, %v502, %v500
      %v505 = vmul.f32 %v504, %v219
      %v506 = vmul.f32 %v503, %v223
      %507 = vrot.lane.b32.xlu0 %v496, 16
      %v508 = vpop.permute.xlu0 %507
      %509 = vrot.lane.b32.xlu0 %v497, 16
      %v510 = vpop.permute.xlu0 %509
      %v511 = vsel %vm230, %v508, %v510
      %v512 = vsel %vm230, %v510, %v508
      %v513 = vmul.f32 %v512, %v236
      %v514 = vmul.f32 %v511, %v240
      %515 = vrot.lane.b32.xlu0 %v496, 15
      %v516 = vpop.permute.xlu0 %515
      %517 = vrot.lane.b32.xlu0 %v497, 15
      %v518 = vpop.permute.xlu0 %517
      %v519 = vsel %vm247, %v516, %v518
      %v520 = vsel %vm247, %v518, %v516
      %v521 = vmul.f32 %v520, %v253
      %v522 = vmul.f32 %v519, %v257
      %523 = vrot.lane.b32.xlu0 %v496, 1
      %v524 = vpop.permute.xlu0 %523
      %525 = vrot.lane.b32.xlu0 %v497, 1
      %v526 = vpop.permute.xlu0 %525
      %v527 = vsel %vm264, %v524, %v526
      %v528 = vsel %vm264, %v526, %v524
      %v529 = vmul.f32 %v528, %v270
      %v530 = vmul.f32 %v527, %v274
      %v531 = vmul.f32 %v496, %v280
      %v532 = vmul.f32 %v497, %v284
      %533 = vrot.lane.b32.xlu0 %v496, 127
      %v534 = vpop.permute.xlu0 %533
      %535 = vrot.lane.b32.xlu0 %v497, 127
      %v536 = vpop.permute.xlu0 %535
      %v537 = vsel %vm294, %v534, %v536
      %v538 = vsel %vm294, %v536, %v534
      %v539 = vmul.f32 %v537, %v300
      %v540 = vmul.f32 %v538, %v304
      %541 = vrot.lane.b32.xlu0 %v496, 113
      %v542 = vpop.permute.xlu0 %541
      %543 = vrot.lane.b32.xlu0 %v497, 113
      %v544 = vpop.permute.xlu0 %543
      %v545 = vsel %vm311, %v542, %v544
      %v546 = vsel %vm311, %v544, %v542
      %v547 = vmul.f32 %v545, %v317
      %v548 = vmul.f32 %v546, %v321
      %549 = vrot.lane.b32.xlu0 %v496, 112
      %v550 = vpop.permute.xlu0 %549
      %551 = vrot.lane.b32.xlu0 %v497, 112
      %v552 = vpop.permute.xlu0 %551
      %v553 = vsel %vm328, %v550, %v552
      %v554 = vsel %vm328, %v552, %v550
      %v555 = vmul.f32 %v553, %v334
      %v556 = vmul.f32 %v554, %v338
      %557 = vrot.lane.b32.xlu0 %v496, 111
      %v558 = vpop.permute.xlu0 %557
      %559 = vrot.lane.b32.xlu0 %v497, 111
      %v560 = vpop.permute.xlu0 %559
      %v561 = vsel %vm345, %v558, %v560
      %v562 = vsel %vm345, %v560, %v558
      %v563 = vmul.f32 %v561, %v351
      %v564 = vmul.f32 %v562, %v355
      %vm565 = vcmask 588800
      %v567 = vsel %vm565, %v498, 0
      %569 = vmatprep.subr.mxu0 0.0
      %570 = vmatpush1.msra.mxu0 0.0
      %571 = vmatprep.subr.mxu0 0.0
      %572 = vmatpush1.msra.mxu0 0.0
      %573 = vmatprep.subr.mxu0 0.0
      %574 = vmatpush1.msra.mxu0 0.0
      %575 = vmatprep.subr.mxu0 0.0
      %576 = vmatpush1.msra.mxu0 0.0
      %577 = vmatprep.subr.mxu0 0.0
      %578 = vmatpush1.msra.mxu0 0.0
      %579 = vmatprep.subr.mxu0 0.0
      %580 = vmatpush1.msra.mxu0 0.0
      %581 = vmatprep.subr.mxu0 0.0
      %582 = vmatpush1.msra.mxu0 0.0
      %583 = vmatprep.subr.mxu0 %v564
      %584 = vmatpush1.msra.mxu0 %v563
      %585 = vmatprep.subr.mxu0 %v556
      %586 = vmatpush1.msra.mxu0 %v555
      %587 = vmatprep.subr.mxu0 %v548
      %588 = vmatpush1.msra.mxu0 %v547
      %589 = vmatprep.subr.mxu0 %v540
      %590 = vmatpush1.msra.mxu0 %v539
      %591 = vmatprep.subr.mxu0 %v532
      %592 = vmatpush1.msra.mxu0 %v531
      %593 = vmatprep.subr.mxu0 %v530
      %594 = vmatpush1.msra.mxu0 %v529
      %595 = vmatprep.subr.mxu0 %v522
      %596 = vmatpush1.msra.mxu0 %v521
      %597 = vmatprep.subr.mxu0 %v514
      %598 = vmatpush1.msra.mxu0 %v513
      %599 = vmatprep.subr.mxu0 %v506
      %600 = vmatpush1.msra.mxu0 %v505
      %601 = vmatprep.subr.mxu0 0.0
      %602 = vmatpush2.msra.mxu0 0.0
      %603 = vmatprep.subr.mxu0 0.0
      %604 = vmatpush2.msra.mxu0 0.0
      %605 = vmatprep.subr.mxu0 0.0
      %606 = vmatpush2.msra.mxu0 0.0
      %607 = vmatprep.subr.mxu0 0.0
      %608 = vmatpush2.msra.mxu0 0.0
      %609 = vmatprep.subr.mxu0 0.0
      %610 = vmatpush2.msra.mxu0 0.0
      %611 = vmatprep.subr.mxu0 0.0
      %612 = vmatpush2.msra.mxu0 0.0
      %613 = vmatprep.subr.mxu0 0.0
      %614 = vmatpush2.msra.mxu0 0.0
      %615 = vmatprep.subr.mxu0 0.0
      %616 = vmatpush2.msra.mxu0 0.0
      %617 = vmatprep.subr.mxu0 0.0
      %618 = vmatpush2.msra.mxu0 0.0
      %619 = vmatprep.subr.mxu0 0.0
      %620 = vmatpush2.msra.mxu0 0.0
      %621 = vmatprep.subr.mxu0 0.0
      %622 = vmatpush2.msra.mxu0 0.0
      %623 = vmatprep.subr.mxu0 0.0
      %624 = vmatpush2.msra.mxu0 0.0
      %625 = vmatprep.subr.mxu0 0.0
      %626 = vmatpush2.msra.mxu0 0.0
      %627 = vmatprep.subr.mxu0 0.0
      %628 = vmatpush2.msra.mxu0 0.0
      %629 = vmatprep.subr.mxu0 0.0
      %630 = vmatpush2.msra.mxu0 0.0
      %631 = vmatprep.subr.mxu0 0.0
      %632 = vmatpush2.msra.mxu0 0.0
      %633 = vmatprep.mubr.f32.mxu0 0.0
      %634 = vmatmul.mubr.f32.gmra.mxu0 %v567
      %v635 = vpop.f32.mrf.mxu0
      %v636 = vadd.f32 0.0, %v635
      %v637 = vpop.f32.mrf.mxu0
      %v638 = vadd.f32 0.0, %v637
      %639 = vdwg.mxu0
      %v640 = vadd.f32 %v636, %v638
      %641 = vadd.xlane.f32.xlu0 %v640
      %v642 = vpop.xlane.xlu0 %641
      %v643 = vmul.f32 %v642, %v478
      %v644 = vsub.f32 %v636, %v643
      %v645 = vsub.f32 %v638, %v643
      %v646 = vmul.f32 %v644, %v644
      %v647 = vmul.f32 %v645, %v645
      %v648 = vadd.f32 %v646, %v647
      %649 = vadd.xlane.f32.xlu0 %v648
      %v650 = vpop.xlane.xlu0 %649
      %v651 = vmul.f32 %v650, %v478
      %v652 = vadd.f32 %v651, 1e-05
      %v653 = vrsqrt.pop %v652
      %v654 = vmul.f32 %v644, %v653
      %v655 = vmul.f32 %v645, %v653
      %vm656 = vcmp.gt.f32.partialorder %v654, 0.0
      %vm657 = vcmp.gt.f32.partialorder %v655, 0.0
      %v658 = vmul.f32 %v654, 0.2
      %v659 = vmul.f32 %v655, 0.2
      %v660 = vsel %vm656, %v654, %v658
      %v661 = vsel %vm657, %v655, %v659
      %662 = vst [vmem:[%s197] sm:$0xff] %v660
      %663 = vst [vmem:[%s197 + $0x8] sm:$0xff] %v661
      %p664 = scmp.lt.s32.totalorder %s15, 1
      %s665 = scalar_select %p664, %s15, 1
      %s666 = smul.addr %s665, 2
      %s667 = smul.addr %s666, 8
      %s668 = scalar_lea.vmem %s4, %s667
      // Predicated region
      $region37: #{conv_block.1} parent=35 // pred_check
        %p669 = pneg %p122
      $region38: #{conv_block.1} parent=35 // pred_check_branch
        %671 = sbr.rel (%p669) target = $region40
      $region39: #{conv_block.1} parent=35 // pred_region
        _
      $region40: #{conv_block.1} parent=35 // pred_fallthru
        _
    $region36: #{conv_block.1} parent=5 // pred_fallthru
      _
    %p672 = scmp.le.s32.totalorder 2, %s10
    // Predicated region
    $region41: #{conv_block.1} parent=5 // pred_check
      %p673 = pneg %p672
    $region42: #{conv_block.1} parent=5 // pred_check_branch
      %675 = sbr.rel (%p673) target = $region44
    $region43: #{conv_block.1} parent=5 // pred_region
      %s676 = ssub.s32 %s10, 2
      // Predicated region
      $region45: #{conv_block.1} parent=43 // pred_check
        %p677 = pneg %p128
      $region46: #{conv_block.1} parent=43 // pred_check_branch
        %679 = sbr.rel (%p677) target = $region48
      $region47: #{conv_block.1} parent=43 // pred_region
        %p680 = scmp.lt.s32.totalorder %s16, 1
        %s681 = scalar_select %p680, %s16, 1
        %s682 = smul.addr %s681, 2
        %s683 = smul.addr %s682, 8
        %s684 = scalar_lea.vmem %s4, %s683
      $region48: #{conv_block.1} parent=43 // pred_fallthru
        _
    $region44: #{conv_block.1} parent=5 // pred_fallthru
      _
  $region6: #{conv_block.1} parent=0 // loop_footer
    %s14 = sadd.s32 1, %s10
  $region7: #{conv_block.1} parent=0 // loop_footer_branch
    %9 = sbr.rel target = $region3
  $region8: #{conv_block.1} parent=0 // loop_exit
    _

</llo_original>
